<compile_context>
chip_gen: v5e
topology: v5e:2x2
jax: 0.10.0
libtpu: 0.0.40
codegen_flags: <defaults>
</compile_context>

<pallas_src>
import jax
import jax.numpy as jnp
from jax.experimental import pallas as pl
from jax.experimental.pallas import tpu as pltpu


_LANES = 512              # lane-dense last dim (4*128 -> unmasked full-width vst)
_ROW_ALIGN = 32           # covers (8,128) f32, (16,128) bf16, (32,128) int8 tiling
_MIN_TILE_ROWS = 256      # below this, a tiled grid is overhead-dominated
_FQ_TILE_ROWS = 2048      # 4 MiB f32 block; in+out double-buffered = 16 MiB
_ABSMAX_TILE_ROWS = 2048  # input-only stream: 4 MiB block, 8 MiB double-buffered
_VMEM_LIMIT = 40 * 1024 * 1024  # headroom under v7x's 64 MiB physical VMEM


def _cdiv(a, b):
    return -(-a // b)


# ---------------------------------------------------------------------------
# Shape plumbing (host-side, static)
# ---------------------------------------------------------------------------
def _largest_aligned_divisor(rows, max_tile):
    t = (max_tile // _ROW_ALIGN) * _ROW_ALIGN
    while t >= _ROW_ALIGN:
        if rows % t == 0:
            return t
        t -= _ROW_ALIGN
    return 0


def _choose_rows_and_tile(rows, max_tile):
    """Pick (padded_rows, tile_rows) with tile_rows | padded_rows.

    For typical shapes this is pad-free: either one full-array block
    (rows <= max_tile) or a sublane-aligned divisor of rows."""
    if rows <= max_tile:
        return rows, rows                       # single block == full array dims
    aligned = _cdiv(rows, _ROW_ALIGN) * _ROW_ALIGN
    t = _largest_aligned_divisor(aligned, max_tile)
    if t >= _MIN_TILE_ROWS:
        return aligned, t                       # aligned == rows for typical shapes
    # rare ugly row count: fall back to padding up to a full tile multiple
    return _cdiv(rows, max_tile) * max_tile, max_tile


def _prep_2d(x, max_tile):
    """Flatten to a lane-dense 2-D view [rows, 512].

    Zero-pads only when the element count is not a multiple of 512 (or for
    rare row counts with no usable aligned divisor)."""
    flat = x.reshape(-1)
    n = flat.size
    rows, tile_rows = _choose_rows_and_tile(_cdiv(n, _LANES), max_tile)
    pad = rows * _LANES - n
    if pad:
        flat = jnp.pad(flat, (0, pad))
    return flat.reshape(rows, _LANES), tile_rows, n


# ---------------------------------------------------------------------------
# absmax (calibration) kernel
# ---------------------------------------------------------------------------
def _absmax(x2d, tile_rows):
    """Return max(|x2d|) as a 0-d f32.

    Grid = (chunks, steps): the leading axis is "parallel" (v7x dual-TC
    sharding); the trailing axis is the HBM-streaming reduction. Each step
    folds |x| onto an (8, lanes) f32 VMEM scratch with pure-VPU maxes; the
    scratch is flushed to a per-chunk output block only at the last step and
    the tiny partials are combined with jnp.max in the wrapper."""
    rows, lanes = x2d.shape
    steps = rows // tile_rows
    num_chunks = 2 if (steps >= 2 and steps % 2 == 0) else 1
    steps_per_chunk = steps // num_chunks

    def kernel(x_ref, part_ref, acc_ref):
        s = pl.program_id(1)

        @pl.when(s == 0)
        def _():
            acc_ref[...] = jnp.zeros_like(acc_ref)  # |x| >= 0 -> 0 is safe init

        ax = jnp.abs(x_ref[...])  # stays in input dtype (bf16 VALU on v6e/v7x)
        if tile_rows % 8 == 0:
            # pure-VPU fold of the row dim onto the 8 sublanes (no XLU chain)
            part = jnp.max(ax.reshape(tile_rows // 8, 8, lanes), axis=0)
        else:
            # tiny single-block case only (rows < 8)
            part = jnp.broadcast_to(jnp.max(ax, axis=0, keepdims=True), (8, lanes))
        acc_ref[...] = jnp.maximum(acc_ref[...], part.astype(jnp.float32))

        @pl.when(s == pl.num_programs(1) - 1)
        def _():
            part_ref[...] = acc_ref[...]

    parts = pl.pallas_call(
        kernel,
        out_shape=jax.ShapeDtypeStruct((num_chunks * 8, lanes), jnp.float32),
        grid=(num_chunks, steps_per_chunk),
        in_specs=[pl.BlockSpec((tile_rows, lanes),
                               lambda c, s: (c * steps_per_chunk + s, 0))],
        out_specs=pl.BlockSpec((8, lanes), lambda c, s: (c, 0)),
        scratch_shapes=[pltpu.VMEM((8, lanes), jnp.float32)],
        compiler_params=pltpu.CompilerParams(
            dimension_semantics=("parallel", "arbitrary"),
            vmem_limit_bytes=_VMEM_LIMIT,
        ),
    )(x2d)
    return jnp.max(parts)  # (num_chunks*8, 512) -> scalar; negligible


# ---------------------------------------------------------------------------
# fake-quant ('onet') kernel
# ---------------------------------------------------------------------------
def _fake_quant(x2d, scale, tile_rows, donate=False):
    """Symmetric int-8 fake quantization:
         int_x = clip(round(x * (1/scale)), -127, 127)
         fp_x  = int_x * scale
    The reciprocal is hoisted to the wrapper (one scalar op) so the hot loop
    is multiply/round/clip/multiply on the VPU; math runs in f32 vregs, I/O
    keeps the input dtype. A zero (uncalibrated) scale propagates inf/NaN,
    matching the reference behaviour."""
    rows, lanes = x2d.shape
    scale = scale.reshape(()).astype(jnp.float32)
    params = jnp.stack([scale, 1.0 / scale])  # (2,) f32 -> SMEM

    def kernel(p_ref, x_ref, o_ref):
        scale_v = p_ref[0]
        inv_v = p_ref[1]
        xf = x_ref[...].astype(jnp.float32)        # widen in-register (v5e-safe)
        q = jnp.clip(jnp.round(xf * inv_v), -127.0, 127.0)
        o_ref[...] = (q * scale_v).astype(o_ref.dtype)

    return pl.pallas_call(
        kernel,
        out_shape=jax.ShapeDtypeStruct(x2d.shape, x2d.dtype),
        grid=(rows // tile_rows,),
        in_specs=[
            pl.BlockSpec(memory_space=pltpu.MemorySpace.SMEM),   # [scale, 1/scale]
            pl.BlockSpec((tile_rows, lanes), lambda i: (i, 0)),  # x tile
        ],
        out_specs=pl.BlockSpec((tile_rows, lanes), lambda i: (i, 0)),
        input_output_aliases=({1: 0} if donate else {}),
        compiler_params=pltpu.CompilerParams(
            dimension_semantics=("parallel",),  # independent tiles (v7x 2 TCs)
            vmem_limit_bytes=_VMEM_LIMIT,
        ),
    )(params, x2d)


# ---------------------------------------------------------------------------
# Module wrapper mirroring wptq_dev/nn/Act.py::QuantAct
# ---------------------------------------------------------------------------
class QuantActPallas:
    """JAX/Pallas port of QuantAct with a symmetric per-tensor int-8 quantizer.

    quant_bit='int-8' -> n_levels = 2**(8-1) - 1 = 127, scale = absmax / 127.
    """

    # TODO(synk): the reference Quantizer class is not provided; a standard
    # symmetric absmax per-tensor quantizer is implemented here.

    def __init__(self, quant_type: str, ops_type="qnet", quant_bit="int-8",
                 donate_activation=False):
        self.ops_name = "Act"
        self.quant_type = quant_type
        self.ops_type = ops_type
        self.quant_bit = quant_bit
        self.quant = False
        self.input_shape = None
        self.output_shape = None
        # Only enable output aliasing when the caller actually donates x;
        # otherwise XLA inserts a defensive copy and it costs more than it saves.
        self.donate_activation = donate_activation
        self._n = float(2 ** (int(quant_bit.split("-")[-1]) - 1) - 1)  # 127
        self._scale = jnp.zeros((1,), jnp.float32)

    # ---- quantizer calibration (update_param) -----------------------------
    # TODO(synk): running-max scale is host-side Python state; under jax.jit
    # this side effect is not captured (same stateful pattern as the torch
    # reference), so calibration should run eagerly.
    def _update_param(self, x):
        x2d, tile_rows, _ = _prep_2d(x, _ABSMAX_TILE_ROWS)
        amax = _absmax(x2d, tile_rows)
        new_scale = jnp.maximum(self._scale[0] * self._n, amax) / self._n
        self._scale = new_scale.reshape(1)

    def celibration(self):  # sic — matches the reference spelling
        self.quant = True

    # ---- forward ----------------------------------------------------------
    def __call__(self, x):
        if self.quant:
            if self.ops_type == "qnet":
                return self._forward_qnet(x)
            elif self.ops_type == "onet":
                return self._forward_onet(x)
            elif self.ops_type == "intinfer":
                return self._forward_intinfer(x)
        else:
            self._update_param(x)
            if self.input_shape is None or self.output_shape is None:
                self.input_shape = x.shape
                self.output_shape = x.shape
            return x

    def _forward_qnet(self, x):
        return x

    def _forward_onet(self, x):
        orig_shape = x.shape
        x2d, tile_rows, n = _prep_2d(x, _FQ_TILE_ROWS)   # keeps input dtype
        y2d = _fake_quant(x2d, self._scale, tile_rows,
                          donate=self.donate_activation)
        if y2d.size == n:                                # typical: no pad/unpad
            return y2d.reshape(orig_shape)
        return y2d.reshape(-1)[:n].reshape(orig_shape)

    def _forward_intinfer(self, x):
        pass  # matches reference: returns None


# ---------------------------------------------------------------------------
# Demo / checks
# ---------------------------------------------------------------------------
if __name__ == "__main__":
    key = jax.random.PRNGKey(0)
    x = jax.random.normal(key, (2, 4, 16, 16), dtype=jnp.float32)  # NCHW

    act = QuantActPallas(quant_type="sym", ops_type="onet", quant_bit="int-8")

    # calibration pass (quant=False): updates quantizer scale, returns x as-is
    y_cal = act(x)
    jax.block_until_ready(y_cal)
    assert y_cal.shape == x.shape

    # absmax kernel sanity vs pure JAX
    scale = act._scale[0]
    jax.block_until_ready(scale)
    assert jnp.allclose(scale, jnp.max(jnp.abs(x)) / 127.0, rtol=1e-6)

    # switch to quantized mode and run the 'onet' fake-quant hot path
    act.celibration()
    y = act(x)
    jax.block_until_ready(y)

    inv = 1.0 / scale
    ref = jnp.clip(jnp.round(x * inv), -127.0, 127.0) * scale
    assert y.shape == x.shape and y.dtype == x.dtype
    assert jnp.allclose(y, ref, atol=1e-6)
    # divide-form reference may differ by at most one quant level at .5 ties
    ref_div = jnp.clip(jnp.round(x / scale), -127.0, 127.0) * scale
    assert float(jnp.max(jnp.abs(y - ref_div))) <= float(scale) + 1e-6

    # dtype preservation: bf16 in -> bf16 out, math in f32 inside the kernel
    xb = x.astype(jnp.bfloat16)
    yb = act(xb)
    jax.block_until_ready(yb)
    assert yb.shape == xb.shape and yb.dtype == jnp.bfloat16
    ref_b = (jnp.clip(jnp.round(xb.astype(jnp.float32) * inv), -127.0, 127.0)
             * scale).astype(jnp.bfloat16)
    assert jnp.allclose(yb.astype(jnp.float32), ref_b.astype(jnp.float32),
                        atol=float(scale))

    # multi-tile / dual-chunk grid paths (forced small tile to exercise them)
    key2 = jax.random.PRNGKey(1)
    xg = jax.random.normal(key2, (128, _LANES), dtype=jnp.float32)
    amax = _absmax(xg, tile_rows=32)            # grid = (2 chunks, 2 steps)
    jax.block_until_ready(amax)
    assert jnp.allclose(amax, jnp.max(jnp.abs(xg)), rtol=1e-6)
    s = jnp.max(jnp.abs(xg)) / 127.0
    yg = _fake_quant(xg, s.reshape(1), tile_rows=32)
    jax.block_until_ready(yg)
    refg = jnp.clip(jnp.round(xg * (1.0 / s)), -127.0, 127.0) * s
    assert jnp.allclose(yg, refg, atol=1e-6)

    print("KERNEL_OK")
</pallas_src>

<mosaic_0001>
module attributes {stable_mosaic.version = 11 : i64} {
  func.func @kernel(%arg0: i32, %arg1: i32, %arg2: memref<4x512xf32, #tpu.memory_space<vmem>>, %arg3: memref<8x512xf32, #tpu.memory_space<vmem>>, %arg4: memref<8x512xf32, #tpu.memory_space<vmem>>) attributes {dimension_semantics = [#tpu.dimension_semantics<parallel>, #tpu.dimension_semantics<arbitrary>], iteration_bounds = array<i64: 1, 1>, scalar_prefetch = 0 : i64, scratch_operands = 1 : i64, tpu.core_type = #tpu.core_type<tc>, window_params = [{transform_indices = @transform_0, window_bounds = array<i64: 4, 512>}, {transform_indices = @transform_1, window_bounds = array<i64: 8, 512>}]} {
    %c0_i32 = arith.constant 0 : i32
    %0 = arith.cmpi eq, %arg1, %c0_i32 : i32
    %1 = arith.extui %0 : i1 to i32
    %c0_i32_0 = arith.constant 0 : i32
    %2 = arith.cmpi ne, %1, %c0_i32_0 : i32
    scf.if %2 {
      %cst_8 = arith.constant 0.000000e+00 : f32
      %15 = vector.broadcast %cst_8 : f32 to vector<8x512xf32>
      %c0_9 = arith.constant 0 : index
      %c0_10 = arith.constant 0 : index
      %16 = vector.load %arg4[%c0_9, %c0_10] : memref<8x512xf32, #tpu.memory_space<vmem>>, vector<8x512xf32>
      tpu.vector_store %arg4[%c0_9, %c0_10], %15 {strides = array<i32>} : memref<8x512xf32, #tpu.memory_space<vmem>>, vector<8x512xf32>,
    } else {
    }
    %c0 = arith.constant 0 : index
    %c0_1 = arith.constant 0 : index
    %3 = vector.load %arg2[%c0, %c0_1] : memref<4x512xf32, #tpu.memory_space<vmem>>, vector<4x512xf32>
    %4 = math.absf %3 : vector<4x512xf32>
    %cst = arith.constant dense<0xFF800000> : vector<512xf32>
    %5 = vector.multi_reduction <maximumf>, %4, %cst [0] : vector<4x512xf32> to vector<512xf32>
    %6 = vector.shape_cast %5 : vector<512xf32> to vector<1x512xf32>
    %7 = vector.shape_cast %6 : vector<1x512xf32> to vector<1x512xf32>
    %8 = vector.broadcast %7 : vector<1x512xf32> to vector<8x512xf32>
    %c0_2 = arith.constant 0 : index
    %c0_3 = arith.constant 0 : index
    %9 = vector.load %arg4[%c0_2, %c0_3] : memref<8x512xf32, #tpu.memory_space<vmem>>, vector<8x512xf32>
    %10 = arith.maximumf %9, %8 : vector<8x512xf32>
    %c0_4 = arith.constant 0 : index
    %c0_5 = arith.constant 0 : index
    %11 = vector.load %arg4[%c0_4, %c0_5] : memref<8x512xf32, #tpu.memory_space<vmem>>, vector<8x512xf32>
    tpu.vector_store %arg4[%c0_4, %c0_5], %10 {strides = array<i32>} : memref<8x512xf32, #tpu.memory_space<vmem>>, vector<8x512xf32>,
    %c0_i32_6 = arith.constant 0 : i32
    %12 = arith.cmpi eq, %arg1, %c0_i32_6 : i32
    %13 = arith.extui %12 : i1 to i32
    %c0_i32_7 = arith.constant 0 : i32
    %14 = arith.cmpi ne, %13, %c0_i32_7 : i32
    scf.if %14 {
      %c0_8 = arith.constant 0 : index
      %c0_9 = arith.constant 0 : index
      %15 = vector.load %arg4[%c0_8, %c0_9] : memref<8x512xf32, #tpu.memory_space<vmem>>, vector<8x512xf32>
      %c0_10 = arith.constant 0 : index
      %c0_11 = arith.constant 0 : index
      %16 = vector.load %arg3[%c0_10, %c0_11] : memref<8x512xf32, #tpu.memory_space<vmem>>, vector<8x512xf32>
      tpu.vector_store %arg3[%c0_10, %c0_11], %15 {strides = array<i32>} : memref<8x512xf32, #tpu.memory_space<vmem>>, vector<8x512xf32>,
    } else {
    }
    return
  }
  func.func @transform_0(%arg0: i32, %arg1: i32) -> (i32, i32) {
    %c1_i32 = arith.constant 1 : i32
    %0 = arith.muli %arg0, %c1_i32 : i32
    %1 = arith.addi %0, %arg1 : i32
    %c0_i32 = arith.constant 0 : i32
    %c0_i32_0 = arith.constant 0 : i32
    return %1, %c0_i32 : i32, i32
  }
  func.func @transform_1(%arg0: i32, %arg1: i32) -> (i32, i32) {
    %c0_i32 = arith.constant 0 : i32
    %c0_i32_0 = arith.constant 0 : i32
    return %arg0, %c0_i32 : i32, i32
  }
}

</mosaic_0001>

<llo_original>
// kernel: tpu_custom_call.1
$region0: #{tpu_custom_call.1}
  #allocation0 [shape = 'u32[]', space=smem, size = 0x4, offset = 0x4, fixed_abs, tag = 'smem constant byte address 0x4 - core index']
  #allocation1 [shape = 'u32[72,128]{1,0:T(1,128)}', space=vmem, size = 0x9000, scoped, tag = 'internal scratch']
  #allocation2 [shape = 'f32[8,512]{1,0:T(8,128)}', space=vmem, size = 0x4000, scoped, tag = 'scratch operand']
  %s0 = inlined_call_operand.hbm [shape: f32[4,512], index: 0, kind: input, shape index: {}]
  %s1 = inlined_call_operand.hbm [shape: f32[8,512], index: 1, kind: output, shape index: {}]
  %s2 = sld [smem:[#allocation0]]
  $region26: #{tpu_custom_call.1} parent=0
    _
  %s4 = ssub.s32 1, %s2
  %s5 = scalar_select 0, %s4, %s2
  $region1: #{tpu_custom_call.1} parent=0
    #allocation3 [shape = 'u8[8192]{0}', space=vmem, size = 0x2000, scoped, tag = 'input window, operand 0, single buffered']
    #allocation4 [shape = 's32[1]{0}', space=sflag, size = 0x4, scoped, tag = 'scoped memory for tpu_custom_call.1']
    #allocation5 [shape = 's32[1]{0}', space=sflag, size = 0x4, scoped, tag = 'scoped memory for tpu_custom_call.1']
    #allocation6 [shape = 'u8[16384]{0}', space=vmem, size = 0x4000, scoped, tag = 'output window, operand 0, single buffered']
    %6 = vsyncpa [#allocation4], 0
    %7 = vsyncpa [#allocation5], 0
    // Predicated region
    $region2: #{tpu_custom_call.1} parent=1 // pred_check
      _
    $region3: #{tpu_custom_call.1} parent=1 // pred_check_branch
      %9 = sbr.rel (0) target = $region5
    $region4: #{tpu_custom_call.1} parent=1 // pred_region
      %s10 = sadd.s32 0, 0
      %12 = vsyncadd [#allocation4], 0
      %s13 = smul.addr %s10, 4
      %s14 = smul.addr %s13, 4
      %s15 = scalar_lea.hbm %s0, %s14
      %s17 = sshll.u32 %s15, 4
      %s18 = int_to_ptr.hbm [resolvable:$true] %s17
      %s19 = sshll.u32 [#allocation3], 4
      %s20 = int_to_ptr.vmem [resolvable:$true] %s19
      %22 = dma.hbm_to_vmem [thread:$0]  %s18, 256, %s20, [#allocation4]
    $region5: #{tpu_custom_call.1} parent=1 // pred_fallthru
      _
    // Predicated region
    $region6: #{tpu_custom_call.1} parent=1 // pred_check
      _
    $region7: #{tpu_custom_call.1} parent=1 // pred_check_branch
      %24 = sbr.rel (0) target = $region9
    $region8: #{tpu_custom_call.1} parent=1 // pred_region
      %26 = dma.done [#allocation4], 256
    $region9: #{tpu_custom_call.1} parent=1 // pred_fallthru
      _
    %s27 = sadd.s32 0, 0
    %p28 = scmp.eq.s32.totalorder 0, 0
    // Predicated region
    $region10: #{tpu_custom_call.1} parent=1 // pred_check
      %p29 = pneg %p28
    $region11: #{tpu_custom_call.1} parent=1 // pred_check_branch
      %31 = sbr.rel (%p29) target = $region13
    $region12: #{tpu_custom_call.1} parent=1 // pred_region
      %32 = vst [vmem:[#allocation2] sm:$0xff] 0.0
      %33 = vst [vmem:[#allocation2 + $0x8] sm:$0xff] 0.0
      %34 = vst [vmem:[#allocation2 + $0x10] sm:$0xff] 0.0
      %35 = vst [vmem:[#allocation2 + $0x18] sm:$0xff] 0.0
    $region13: #{tpu_custom_call.1} parent=1 // pred_fallthru
      _
    %v36 = vld [vmem:[#allocation3] sm:$0xff]
    %v37 = vld [vmem:[#allocation3 + $0x8] sm:$0xff]
    %v38 = vand.u32 2147483647, %v36
    %v39 = vand.u32 2147483647, %v37
    %42 = vst [vmem:[#allocation1] ss:$2 sm:$0xff] %v38
    %s43 = scalar_lea.vmem [#allocation1], 16
    %44 = vst [vmem:[%s43] ss:$2 sm:$0xff] %v39
    %v45 = vld.sshfl [vmem:[#allocation1] sm:$0xff pattern:$0x75316420]
    %v46 = vld.sshfl [vmem:[#allocation1 + $0x8] sm:$0xff pattern:$0x75316420]
    %v47 = vld.sshfl [vmem:[#allocation1 + $0x10] sm:$0xff pattern:$0x75316420]
    %v48 = vld.sshfl [vmem:[#allocation1 + $0x18] sm:$0xff pattern:$0x75316420]
    %vm53 = vcmask 1043456
    %v54 = vsel %vm53, %v45, -inf
    %v55 = vrot.slane %v54, 4
    %v56 = vmax.f32 %v54, %v55
    %v57 = vrot.slane %v56, 2
    %v58 = vmax.f32 %v56, %v57
    %v59 = vrot.slane %v58, 1
    %v60 = vmax.f32 %v58, %v59
    %v61 = vsel %vm53, %v46, -inf
    %v62 = vrot.slane %v61, 4
    %v63 = vmax.f32 %v61, %v62
    %v64 = vrot.slane %v63, 2
    %v65 = vmax.f32 %v63, %v64
    %v66 = vrot.slane %v65, 1
    %v67 = vmax.f32 %v65, %v66
    %v68 = vsel %vm53, %v47, -inf
    %v69 = vrot.slane %v68, 4
    %v70 = vmax.f32 %v68, %v69
    %v71 = vrot.slane %v70, 2
    %v72 = vmax.f32 %v70, %v71
    %v73 = vrot.slane %v72, 1
    %v74 = vmax.f32 %v72, %v73
    %v75 = vsel %vm53, %v48, -inf
    %v76 = vrot.slane %v75, 4
    %v77 = vmax.f32 %v75, %v76
    %v78 = vrot.slane %v77, 2
    %v79 = vmax.f32 %v77, %v78
    %v80 = vrot.slane %v79, 1
    %v81 = vmax.f32 %v79, %v80
    %v82 = vld [vmem:[#allocation2] sm:$0xff]
    %v83 = vld [vmem:[#allocation2 + $0x8] sm:$0xff]
    %v84 = vld [vmem:[#allocation2 + $0x10] sm:$0xff]
    %v85 = vld [vmem:[#allocation2 + $0x18] sm:$0xff]
    %v86 = vmax.f32 %v82, %v60
    %v87 = vmax.f32 %v83, %v67
    %v88 = vmax.f32 %v84, %v74
    %v89 = vmax.f32 %v85, %v81
    %90 = vst [vmem:[#allocation2] sm:$0xff] %v86
    %91 = vst [vmem:[#allocation2 + $0x8] sm:$0xff] %v87
    %92 = vst [vmem:[#allocation2 + $0x10] sm:$0xff] %v88
    %93 = vst [vmem:[#allocation2 + $0x18] sm:$0xff] %v89
    // Predicated region
    $region14: #{tpu_custom_call.1} parent=1 // pred_check
      %p94 = pneg %p28
    $region15: #{tpu_custom_call.1} parent=1 // pred_check_branch
      %96 = sbr.rel (%p94) target = $region17
    $region16: #{tpu_custom_call.1} parent=1 // pred_region
      %v97 = vld [vmem:[#allocation2] sm:$0xff]
      %v98 = vld [vmem:[#allocation2 + $0x8] sm:$0xff]
      %v99 = vld [vmem:[#allocation2 + $0x10] sm:$0xff]
      %v100 = vld [vmem:[#allocation2 + $0x18] sm:$0xff]
      %101 = vst [vmem:[#allocation6] sm:$0xff] %v97
      %102 = vst [vmem:[#allocation6 + $0x8] sm:$0xff] %v98
      %103 = vst [vmem:[#allocation6 + $0x10] sm:$0xff] %v99
      %104 = vst [vmem:[#allocation6 + $0x18] sm:$0xff] %v100
    $region17: #{tpu_custom_call.1} parent=1 // pred_fallthru
      _
    // Predicated region
    $region18: #{tpu_custom_call.1} parent=1 // pred_check
      _
    $region19: #{tpu_custom_call.1} parent=1 // pred_check_branch
      %106 = sbr.rel (0) target = $region21
    $region20: #{tpu_custom_call.1} parent=1 // pred_region
      %108 = vsyncadd [#allocation5], 0
      %s110 = sshll.u32 [#allocation6], 4
      %s111 = int_to_ptr.vmem [resolvable:$true] %s110
      %s112 = sshll.u32 %s1, 4
      %s113 = int_to_ptr.hbm [resolvable:$true] %s112
      %115 = dma.vmem_to_hbm [thread:$0]  %s111, 512, %s113, [#allocation5]
    $region21: #{tpu_custom_call.1} parent=1 // pred_fallthru
      _
    // Predicated region
    $region22: #{tpu_custom_call.1} parent=1 // pred_check
      _
    $region23: #{tpu_custom_call.1} parent=1 // pred_check_branch
      %117 = sbr.rel (0) target = $region25
    $region24: #{tpu_custom_call.1} parent=1 // pred_region
      %119 = dma.done [#allocation5], 512
    $region25: #{tpu_custom_call.1} parent=1 // pred_fallthru
      _
    %120 = vsyncpa [#allocation4], 1
    %121 = vsyncpa [#allocation5], 1

</llo_original>
